<compile_context>
chip_gen: v6e
topology: v6e:2x2x1
jax: 0.10.0
libtpu: 0.0.40
codegen_flags: <defaults>
</compile_context>

<pallas_src>
import numpy as np
import jax
import jax.numpy as jnp
from jax.experimental import pallas as pl
from jax.experimental.pallas import tpu as pltpu


def _round_up(v, m):
    return (v + m - 1) // m * m


def _pick_batch(n, hw_p, target_lanes=4096):
    """Largest divisor of n keeping B*HW_p around target_lanes lanes."""
    bmax = max(1, min(n, target_lanes // hw_p if hw_p <= target_lanes else 1))
    for b in range(bmax, 0, -1):
        if n % b == 0:
            return b
    return 1


_TAPS = tuple((ky - 1, kx - 1) for ky in range(3) for kx in range(3))
_CENTER = 4  # index of (dy, dx) == (0, 0) in _TAPS


def _build_kernel(W, LW, Cin_p, Cout_p):
    def kernel(x_ref, wfa_ref, w3b_ref, bias2_ref, mask_ref, pre_ref,
               out_ref, col_ref):
        # x_ref    : (1, Cin_p, LW) f32    B lane-concat images, channels on
        #                                  sublanes (channel Cin is all-ones)
        # wfa_ref  : (2*Cout_p, 9*Cin_p) bf16  fused [3x3a ; 1x1 res] weights
        #                                  (BN scale + stage-1 biases folded)
        # w3b_ref  : (Cout_p, 9*Cout_p) bf16   3x3 conv #2 (BN scale folded)
        # bias2_ref: (Cout_p, 1) f32       folded BN bias of conv #2
        # mask_ref : (9, C_b, LW) f32      per-tap validity masks, sublane
        #                                  pre-broadcast, tiled per image
        # pre_ref  : (2,) f32 in SMEM      PReLU slopes
        # out_ref  : (1, Cout_p, LW) f32   lane-dense output
        # col_ref  : (9*C_b, LW) f32       reusable im2col scratch
        x = x_ref[0]

        def im2col_into(v, c):
            # v: (c, LW) -> col_ref[:9*c]; tap k holds v shifted by (dy, dx),
            # zeroed outside each image ('same' zero padding / image seams).
            for k, (dy, dx) in enumerate(_TAPS):
                if dy == 0 and dx == 0:
                    sh = v
                else:
                    s = dy * W + dx                      # flattened lane shift
                    sh = pltpu.roll(v, (-s) % LW, 1)     # sh[:, p] = v[:, p+s]
                    sh = sh * mask_ref[k, :c, :]         # zero the wrapped halo
                col_ref[k * c:(k + 1) * c, :] = sh

        # ---- stage 1: one fused matmul = [3x3 conv #1 ; 1x1 res conv] -------
        # (BN scales and both stage-1 biases live in the weights; the bias
        #  column multiplies the injected all-ones input channel.)
        im2col_into(x, Cin_p)
        cols = col_ref[:9 * Cin_p, :].astype(jnp.bfloat16)
        f = jnp.dot(wfa_ref[...], cols, preferred_element_type=jnp.float32)
        y = f[:Cout_p, :]                                # conv branch, pre-PReLU
        block = f[Cout_p:, :]                            # resblock branch
        y = jnp.where(y > 0, y, pre_ref[0] * y)          # PReLU #1

        # ---- stage 2: 3x3 conv #2 (+ folded BN scale) + bias + PReLU --------
        im2col_into(y, Cout_p)
        cols2 = col_ref[:9 * Cout_p, :].astype(jnp.bfloat16)
        z = jnp.dot(w3b_ref[...], cols2, preferred_element_type=jnp.float32)
        z = z + bias2_ref[...]
        z = jnp.where(z > 0, z, pre_ref[1] * z)          # PReLU #2

        # ---- residual add (Dropout == identity in eval); lane-dense store ---
        out_ref[0] = z + block

    return kernel


def mcc_block_forward(x_nchw, params, *, target_lanes=4096):
    """Eval-mode MccBlock forward.  x: (N, Cin, H, W) f32 -> (N, Cout, H, W)."""
    w1, w3a, w3b, bn_scale, bn_bias, prelu = params
    N, Cin, H, W = x_nchw.shape
    Cout = w1.shape[-1]
    HW = H * W
    HW_p = _round_up(HW, 128)            # lane-aligned per-image length
    Cin_p = _round_up(Cin + 1, 8)        # +1 spare channel carries stage-1 biases
    Cout_p = _round_up(Cout, 8)
    C_b = max(Cin_p, Cout_p)

    B = _pick_batch(N, HW_p, target_lanes)   # images per grid step
    G = N // B
    LW = B * HW_p                            # lane width per grid step
    ones_col = Cin                           # index of the injected ones channel

    # ---- fold BN scale (+ stage-1 biases) into the conv weights --------------
    w1_m = w1.T * bn_scale[0][:, None]                                  # (Cout, Cin)
    w3a_m = (jnp.transpose(w3a, (3, 0, 1, 2)).reshape(Cout, 9, Cin)
             * bn_scale[1][:, None, None])                              # (Cout, 9, Cin)
    w3b_m = (jnp.transpose(w3b, (3, 0, 1, 2)).reshape(Cout, 9, Cout)
             * bn_scale[2][:, None, None])                              # (Cout, 9, Cout)

    # Fused stage-1 LHS: rows [0, Cout) = 3x3 conv #1; rows [Cout_p, Cout_p+Cout)
    # = 1x1 resblock conv (centre tap only).  Biases sit in the ones-channel
    # column of the centre tap.
    wfa = jnp.zeros((2 * Cout_p, 9, Cin_p), jnp.float32)
    wfa = wfa.at[:Cout, :, :Cin].set(w3a_m)
    wfa = wfa.at[:Cout, _CENTER, ones_col].set(bn_bias[1])
    wfa = wfa.at[Cout_p:Cout_p + Cout, _CENTER, :Cin].set(w1_m)
    wfa = wfa.at[Cout_p:Cout_p + Cout, _CENTER, ones_col].set(bn_bias[0])
    wfa = wfa.reshape(2 * Cout_p, 9 * Cin_p).astype(jnp.bfloat16)

    w3b_p = (jnp.zeros((Cout_p, 9, Cout_p), jnp.float32)
             .at[:Cout, :, :Cout].set(w3b_m)
             .reshape(Cout_p, 9 * Cout_p).astype(jnp.bfloat16))

    bias2 = jnp.zeros((Cout_p, 1), jnp.float32).at[:Cout, 0].set(bn_bias[2])
    prelu = prelu.astype(jnp.float32)

    # ---- per-tap 'same'-padding masks: pad lanes + image seams zeroed, -------
    # ---- pre-broadcast over sublanes, tiled per image along the lane axis ----
    r = jnp.arange(H)[:, None]
    c = jnp.arange(W)[None, :]
    masks = []
    for dy, dx in _TAPS:
        m = ((r + dy >= 0) & (r + dy < H) & (c + dx >= 0) & (c + dx < W))
        masks.append(jnp.pad(m.reshape(HW).astype(jnp.float32),
                             (0, HW_p - HW)))
    tap_masks = jnp.tile(jnp.stack(masks, 0), (1, B))                   # (9, LW)
    tap_masks = jnp.broadcast_to(tap_masks[:, None, :], (9, C_b, LW))

    # ---- pack x: NCHW -> (G, Cin_p, B*HW_p) with an all-ones bias channel ----
    x_flat = x_nchw.reshape(N, Cin, HW).astype(jnp.float32)
    x_flat = jnp.concatenate(
        [x_flat,
         jnp.ones((N, 1, HW), jnp.float32),
         jnp.zeros((N, Cin_p - Cin - 1, HW), jnp.float32)], axis=1)
    x_flat = jnp.pad(x_flat, ((0, 0), (0, 0), (0, HW_p - HW)))
    x_g = (x_flat.reshape(G, B, Cin_p, HW_p)
           .transpose(0, 2, 1, 3).reshape(G, Cin_p, LW))

    kernel = _build_kernel(W, LW, Cin_p, Cout_p)

    out = pl.pallas_call(
        kernel,
        out_shape=jax.ShapeDtypeStruct((G, Cout_p, LW), jnp.float32),
        grid_spec=pltpu.PrefetchScalarGridSpec(
            num_scalar_prefetch=0,
            grid=(G,),
            in_specs=[
                pl.BlockSpec((1, Cin_p, LW), lambda g: (g, 0, 0)),
                pl.BlockSpec((2 * Cout_p, 9 * Cin_p), lambda g: (0, 0)),
                pl.BlockSpec((Cout_p, 9 * Cout_p), lambda g: (0, 0)),
                pl.BlockSpec((Cout_p, 1), lambda g: (0, 0)),
                pl.BlockSpec((9, C_b, LW), lambda g: (0, 0, 0)),
                pl.BlockSpec(memory_space=pltpu.MemorySpace.SMEM),
            ],
            out_specs=pl.BlockSpec((1, Cout_p, LW), lambda g: (g, 0, 0)),
            scratch_shapes=[pltpu.VMEM((9 * C_b, LW), jnp.float32)],
        ),
        compiler_params=pltpu.CompilerParams(
            dimension_semantics=("parallel",)),
    )(x_g, wfa, w3b_p, bias2, tap_masks, prelu)

    # Undo lane concat + channel/lane padding -> (N, Cout, H, W).
    out = (out.reshape(G, Cout_p, B, HW_p).transpose(0, 2, 1, 3)
           .reshape(N, Cout_p, HW_p)[:, :Cout, :HW].reshape(N, Cout, H, W))
    return out


def make_params(key, in_c, out_c):
    """Deterministic synthetic parameters (mirrors the torch module's shapes)."""
    ks = jax.random.split(key, 6)
    eps = 1e-5

    w1 = jax.random.normal(ks[0], (in_c, out_c), jnp.float32) * 0.2          # 1x1
    w3a = jax.random.normal(ks[1], (3, 3, in_c, out_c), jnp.float32) * 0.2   # 3x3 #1
    w3b = jax.random.normal(ks[2], (3, 3, out_c, out_c), jnp.float32) * 0.2  # 3x3 #2

    def bn(k):
        kg, kb, km, kv = jax.random.split(k, 4)
        gamma = 1.0 + 0.1 * jax.random.normal(kg, (out_c,), jnp.float32)
        beta = 0.1 * jax.random.normal(kb, (out_c,), jnp.float32)
        mean = 0.1 * jax.random.normal(km, (out_c,), jnp.float32)
        var = jnp.abs(jax.random.normal(kv, (out_c,), jnp.float32)) + 0.5
        scale = gamma / jnp.sqrt(var + eps)
        bias = beta - mean * scale
        return scale, bias

    s0, b0 = bn(ks[3])   # Resblock BN
    s1, b1 = bn(ks[4])   # Conv BN1
    s2, b2 = bn(ks[5])   # Conv BN2

    bn_scale = jnp.stack([s0, s1, s2], axis=0)
    bn_bias = jnp.stack([b0, b1, b2], axis=0)
    prelu = jnp.array([0.25, 0.25], jnp.float32)  # PyTorch PReLU default init
    return (w1, w3a, w3b, bn_scale, bn_bias, prelu)


def ref_forward(x_nchw, params):
    """Pure-JAX f32 reference (lax.conv, eval-mode folded BN) for checking."""
    w1, w3a, w3b, bn_scale, bn_bias, prelu = params
    x = jnp.transpose(x_nchw, (0, 2, 3, 1))  # NHWC
    dn = ("NHWC", "HWIO", "NHWC")

    block = jax.lax.conv_general_dilated(x, w1[None, None], (1, 1), "VALID",
                                         dimension_numbers=dn)
    block = block * bn_scale[0] + bn_bias[0]

    y = jax.lax.conv_general_dilated(x, w3a, (1, 1), "SAME",
                                     dimension_numbers=dn)
    y = y * bn_scale[1] + bn_bias[1]
    y = jnp.where(y > 0, y, prelu[0] * y)

    z = jax.lax.conv_general_dilated(y, w3b, (1, 1), "SAME",
                                     dimension_numbers=dn)
    z = z * bn_scale[2] + bn_bias[2]
    z = jnp.where(z > 0, z, prelu[1] * z)

    out = z + block
    return jnp.transpose(out, (0, 3, 1, 2))


if __name__ == "__main__":
    N, Cin, Cout, H, W = 2, 4, 8, 16, 16
    key = jax.random.PRNGKey(0)
    k_x, k_p = jax.random.split(key)

    x = jax.random.normal(k_x, (N, Cin, H, W), jnp.float32)
    params = make_params(k_p, Cin, Cout)

    out = jax.block_until_ready(mcc_block_forward(x, params))
    ref = ref_forward(x, params)
    # bf16 matmul operands (f32 accumulation) => looser tolerance vs f32 ref.
    np.testing.assert_allclose(np.asarray(out), np.asarray(ref),
                               rtol=5e-2, atol=5e-2)
    print("KERNEL_OK")
</pallas_src>

<mosaic_0001>
module attributes {stable_mosaic.version = 11 : i64} {
  func.func @kernel(%arg0: i32, %arg1: memref<1x8x512xf32, #tpu.memory_space<vmem>>, %arg2: memref<16x72xbf16, #tpu.memory_space<vmem>>, %arg3: memref<8x72xbf16, #tpu.memory_space<vmem>>, %arg4: memref<8x1xf32, #tpu.memory_space<vmem>>, %arg5: memref<9x8x512xf32, #tpu.memory_space<vmem>>, %arg6: memref<2xf32, #tpu.memory_space<smem>>, %arg7: memref<1x8x512xf32, #tpu.memory_space<vmem>>, %arg8: memref<72x512xf32, #tpu.memory_space<vmem>>) attributes {dimension_semantics = [#tpu.dimension_semantics<parallel>], iteration_bounds = array<i64: 1>, scalar_prefetch = 0 : i64, scratch_operands = 1 : i64, tpu.core_type = #tpu.core_type<tc>, window_params = [{transform_indices = @transform_0, window_bounds = array<i64: 1, 8, 512>}, {pipeline_mode = #tpu.pipeline_mode<synchronous>, transform_indices = @transform_1, window_bounds = array<i64: 16, 72>}, {pipeline_mode = #tpu.pipeline_mode<synchronous>, transform_indices = @transform_2, window_bounds = array<i64: 8, 72>}, {pipeline_mode = #tpu.pipeline_mode<synchronous>, transform_indices = @transform_3, window_bounds = array<i64: 8, 1>}, {pipeline_mode = #tpu.pipeline_mode<synchronous>, transform_indices = @transform_4, window_bounds = array<i64: 9, 8, 512>}, {transform_indices = @transform_5, window_bounds = array<i64: 2>}, {transform_indices = @transform_6, window_bounds = array<i64: 1, 8, 512>}]} {
    %c0 = arith.constant 0 : index
    %c0_0 = arith.constant 0 : index
    %c0_1 = arith.constant 0 : index
    %0 = vector.load %arg1[%c0, %c0_0, %c0_1] : memref<1x8x512xf32, #tpu.memory_space<vmem>>, vector<1x8x512xf32>
    %1 = vector.shape_cast %0 : vector<1x8x512xf32> to vector<8x512xf32>
    %c17_i32 = arith.constant 17 : i32
    %2 = tpu.dynamic_rotate %1 by %c17_i32 dim 1 : vector<8x512xf32>, i32 -> vector<8x512xf32>
    %c0_2 = arith.constant 0 : index
    %c0_3 = arith.constant 0 : index
    %c0_4 = arith.constant 0 : index
    %3 = vector.load %arg5[%c0_2, %c0_3, %c0_4] : memref<9x8x512xf32, #tpu.memory_space<vmem>>, vector<1x8x512xf32>
    %4 = vector.shape_cast %3 : vector<1x8x512xf32> to vector<8x512xf32>
    %5 = arith.mulf %2, %4 : vector<8x512xf32>
    %c0_5 = arith.constant 0 : index
    %c0_6 = arith.constant 0 : index
    %6 = vector.load %arg8[%c0_5, %c0_6] : memref<72x512xf32, #tpu.memory_space<vmem>>, vector<8x512xf32>
    tpu.vector_store %arg8[%c0_5, %c0_6], %5 {strides = array<i32>} : memref<72x512xf32, #tpu.memory_space<vmem>>, vector<8x512xf32>,
    %c16_i32 = arith.constant 16 : i32
    %7 = tpu.dynamic_rotate %1 by %c16_i32 dim 1 : vector<8x512xf32>, i32 -> vector<8x512xf32>
    %c1 = arith.constant 1 : index
    %c0_7 = arith.constant 0 : index
    %c0_8 = arith.constant 0 : index
    %8 = vector.load %arg5[%c1, %c0_7, %c0_8] : memref<9x8x512xf32, #tpu.memory_space<vmem>>, vector<1x8x512xf32>
    %9 = vector.shape_cast %8 : vector<1x8x512xf32> to vector<8x512xf32>
    %10 = arith.mulf %7, %9 : vector<8x512xf32>
    %c8 = arith.constant 8 : index
    %c0_9 = arith.constant 0 : index
    %11 = vector.load %arg8[%c8, %c0_9] : memref<72x512xf32, #tpu.memory_space<vmem>>, vector<8x512xf32>
    tpu.vector_store %arg8[%c8, %c0_9], %10 {strides = array<i32>} : memref<72x512xf32, #tpu.memory_space<vmem>>, vector<8x512xf32>,
    %c15_i32 = arith.constant 15 : i32
    %12 = tpu.dynamic_rotate %1 by %c15_i32 dim 1 : vector<8x512xf32>, i32 -> vector<8x512xf32>
    %c2 = arith.constant 2 : index
    %c0_10 = arith.constant 0 : index
    %c0_11 = arith.constant 0 : index
    %13 = vector.load %arg5[%c2, %c0_10, %c0_11] : memref<9x8x512xf32, #tpu.memory_space<vmem>>, vector<1x8x512xf32>
    %14 = vector.shape_cast %13 : vector<1x8x512xf32> to vector<8x512xf32>
    %15 = arith.mulf %12, %14 : vector<8x512xf32>
    %c16 = arith.constant 16 : index
    %c0_12 = arith.constant 0 : index
    %16 = vector.load %arg8[%c16, %c0_12] : memref<72x512xf32, #tpu.memory_space<vmem>>, vector<8x512xf32>
    tpu.vector_store %arg8[%c16, %c0_12], %15 {strides = array<i32>} : memref<72x512xf32, #tpu.memory_space<vmem>>, vector<8x512xf32>,
    %c1_i32 = arith.constant 1 : i32
    %17 = tpu.dynamic_rotate %1 by %c1_i32 dim 1 : vector<8x512xf32>, i32 -> vector<8x512xf32>
    %c3 = arith.constant 3 : index
    %c0_13 = arith.constant 0 : index
    %c0_14 = arith.constant 0 : index
    %18 = vector.load %arg5[%c3, %c0_13, %c0_14] : memref<9x8x512xf32, #tpu.memory_space<vmem>>, vector<1x8x512xf32>
    %19 = vector.shape_cast %18 : vector<1x8x512xf32> to vector<8x512xf32>
    %20 = arith.mulf %17, %19 : vector<8x512xf32>
    %c24 = arith.constant 24 : index
    %c0_15 = arith.constant 0 : index
    %21 = vector.load %arg8[%c24, %c0_15] : memref<72x512xf32, #tpu.memory_space<vmem>>, vector<8x512xf32>
    tpu.vector_store %arg8[%c24, %c0_15], %20 {strides = array<i32>} : memref<72x512xf32, #tpu.memory_space<vmem>>, vector<8x512xf32>,
    %c32 = arith.constant 32 : index
    %c0_16 = arith.constant 0 : index
    %22 = vector.load %arg8[%c32, %c0_16] : memref<72x512xf32, #tpu.memory_space<vmem>>, vector<8x512xf32>
    tpu.vector_store %arg8[%c32, %c0_16], %1 {strides = array<i32>} : memref<72x512xf32, #tpu.memory_space<vmem>>, vector<8x512xf32>,
    %c511_i32 = arith.constant 511 : i32
    %23 = tpu.dynamic_rotate %1 by %c511_i32 dim 1 : vector<8x512xf32>, i32 -> vector<8x512xf32>
    %c5 = arith.constant 5 : index
    %c0_17 = arith.constant 0 : index
    %c0_18 = arith.constant 0 : index
    %24 = vector.load %arg5[%c5, %c0_17, %c0_18] : memref<9x8x512xf32, #tpu.memory_space<vmem>>, vector<1x8x512xf32>
    %25 = vector.shape_cast %24 : vector<1x8x512xf32> to vector<8x512xf32>
    %26 = arith.mulf %23, %25 : vector<8x512xf32>
    %c40 = arith.constant 40 : index
    %c0_19 = arith.constant 0 : index
    %27 = vector.load %arg8[%c40, %c0_19] : memref<72x512xf32, #tpu.memory_space<vmem>>, vector<8x512xf32>
    tpu.vector_store %arg8[%c40, %c0_19], %26 {strides = array<i32>} : memref<72x512xf32, #tpu.memory_space<vmem>>, vector<8x512xf32>,
    %c497_i32 = arith.constant 497 : i32
    %28 = tpu.dynamic_rotate %1 by %c497_i32 dim 1 : vector<8x512xf32>, i32 -> vector<8x512xf32>
    %c6 = arith.constant 6 : index
    %c0_20 = arith.constant 0 : index
    %c0_21 = arith.constant 0 : index
    %29 = vector.load %arg5[%c6, %c0_20, %c0_21] : memref<9x8x512xf32, #tpu.memory_space<vmem>>, vector<1x8x512xf32>
    %30 = vector.shape_cast %29 : vector<1x8x512xf32> to vector<8x512xf32>
    %31 = arith.mulf %28, %30 : vector<8x512xf32>
    %c48 = arith.constant 48 : index
    %c0_22 = arith.constant 0 : index
    %32 = vector.load %arg8[%c48, %c0_22] : memref<72x512xf32, #tpu.memory_space<vmem>>, vector<8x512xf32>
    tpu.vector_store %arg8[%c48, %c0_22], %31 {strides = array<i32>} : memref<72x512xf32, #tpu.memory_space<vmem>>, vector<8x512xf32>,
    %c496_i32 = arith.constant 496 : i32
    %33 = tpu.dynamic_rotate %1 by %c496_i32 dim 1 : vector<8x512xf32>, i32 -> vector<8x512xf32>
    %c7 = arith.constant 7 : index
    %c0_23 = arith.constant 0 : index
    %c0_24 = arith.constant 0 : index
    %34 = vector.load %arg5[%c7, %c0_23, %c0_24] : memref<9x8x512xf32, #tpu.memory_space<vmem>>, vector<1x8x512xf32>
    %35 = vector.shape_cast %34 : vector<1x8x512xf32> to vector<8x512xf32>
    %36 = arith.mulf %33, %35 : vector<8x512xf32>
    %c56 = arith.constant 56 : index
    %c0_25 = arith.constant 0 : index
    %37 = vector.load %arg8[%c56, %c0_25] : memref<72x512xf32, #tpu.memory_space<vmem>>, vector<8x512xf32>
    tpu.vector_store %arg8[%c56, %c0_25], %36 {strides = array<i32>} : memref<72x512xf32, #tpu.memory_space<vmem>>, vector<8x512xf32>,
    %c495_i32 = arith.constant 495 : i32
    %38 = tpu.dynamic_rotate %1 by %c495_i32 dim 1 : vector<8x512xf32>, i32 -> vector<8x512xf32>
    %c8_26 = arith.constant 8 : index
    %c0_27 = arith.constant 0 : index
    %c0_28 = arith.constant 0 : index
    %39 = vector.load %arg5[%c8_26, %c0_27, %c0_28] : memref<9x8x512xf32, #tpu.memory_space<vmem>>, vector<1x8x512xf32>
    %40 = vector.shape_cast %39 : vector<1x8x512xf32> to vector<8x512xf32>
    %41 = arith.mulf %38, %40 : vector<8x512xf32>
    %c64 = arith.constant 64 : index
    %c0_29 = arith.constant 0 : index
    %42 = vector.load %arg8[%c64, %c0_29] : memref<72x512xf32, #tpu.memory_space<vmem>>, vector<8x512xf32>
    tpu.vector_store %arg8[%c64, %c0_29], %41 {strides = array<i32>} : memref<72x512xf32, #tpu.memory_space<vmem>>, vector<8x512xf32>,
    %c0_30 = arith.constant 0 : index
    %c0_31 = arith.constant 0 : index
    %43 = vector.load %arg8[%c0_30, %c0_31] : memref<72x512xf32, #tpu.memory_space<vmem>>, vector<72x512xf32>
    %44 = arith.truncf %43 : vector<72x512xf32> to vector<72x512xbf16>
    %c0_32 = arith.constant 0 : index
    %c0_33 = arith.constant 0 : index
    %45 = vector.load %arg2[%c0_32, %c0_33] : memref<16x72xbf16, #tpu.memory_space<vmem>>, vector<16x72xbf16>
    %cst = arith.constant dense<0.000000e+00> : vector<16x512xf32>
    %46 = tpu.matmul %45, %44, %cst {dimension_numbers = #tpu.dot_dimension_numbers<[1], [0], [0], [1], [0, 0, 1, 1], [], []>} : vector<16x72xbf16>, vector<72x512xbf16>, vector<16x512xf32> -> vector<16x512xf32>
    %47 = vector.extract_strided_slice %46 {offsets = [0, 0], sizes = [8, 512], strides = [1, 1]} : vector<16x512xf32> to vector<8x512xf32>
    %48 = vector.extract_strided_slice %46 {offsets = [8, 0], sizes = [8, 512], strides = [1, 1]} : vector<16x512xf32> to vector<8x512xf32>
    %cst_34 = arith.constant 0.000000e+00 : f32
    %49 = vector.broadcast %cst_34 : f32 to vector<8x512xf32>
    %50 = arith.cmpf ogt, %47, %49 : vector<8x512xf32>
    %c0_35 = arith.constant 0 : index
    %51 = memref.load %arg6[%c0_35] : memref<2xf32, #tpu.memory_space<smem>>
    %52 = vector.broadcast %51 : f32 to vector<8x512xf32>
    %53 = arith.mulf %52, %47 : vector<8x512xf32>
    %54 = arith.select %50, %47, %53 : vector<8x512xi1>, vector<8x512xf32>
    %c17_i32_36 = arith.constant 17 : i32
    %55 = tpu.dynamic_rotate %54 by %c17_i32_36 dim 1 : vector<8x512xf32>, i32 -> vector<8x512xf32>
    %c0_37 = arith.constant 0 : index
    %c0_38 = arith.constant 0 : index
    %c0_39 = arith.constant 0 : index
    %56 = vector.load %arg5[%c0_37, %c0_38, %c0_39] : memref<9x8x512xf32, #tpu.memory_space<vmem>>, vector<1x8x512xf32>
    %57 = vector.shape_cast %56 : vector<1x8x512xf32> to vector<8x512xf32>
    %58 = arith.mulf %55, %57 : vector<8x512xf32>
    %c0_40 = arith.constant 0 : index
    %c0_41 = arith.constant 0 : index
    %59 = vector.load %arg8[%c0_40, %c0_41] : memref<72x512xf32, #tpu.memory_space<vmem>>, vector<8x512xf32>
    tpu.vector_store %arg8[%c0_40, %c0_41], %58 {strides = array<i32>} : memref<72x512xf32, #tpu.memory_space<vmem>>, vector<8x512xf32>,
    %c16_i32_42 = arith.constant 16 : i32
    %60 = tpu.dynamic_rotate %54 by %c16_i32_42 dim 1 : vector<8x512xf32>, i32 -> vector<8x512xf32>
    %c1_43 = arith.constant 1 : index
    %c0_44 = arith.constant 0 : index
    %c0_45 = arith.constant 0 : index
    %61 = vector.load %arg5[%c1_43, %c0_44, %c0_45] : memref<9x8x512xf32, #tpu.memory_space<vmem>>, vector<1x8x512xf32>
    %62 = vector.shape_cast %61 : vector<1x8x512xf32> to vector<8x512xf32>
    %63 = arith.mulf %60, %62 : vector<8x512xf32>
    %c8_46 = arith.constant 8 : index
    %c0_47 = arith.constant 0 : index
    %64 = vector.load %arg8[%c8_46, %c0_47] : memref<72x512xf32, #tpu.memory_space<vmem>>, vector<8x512xf32>
    tpu.vector_store %arg8[%c8_46, %c0_47], %63 {strides = array<i32>} : memref<72x512xf32, #tpu.memory_space<vmem>>, vector<8x512xf32>,
    %c15_i32_48 = arith.constant 15 : i32
    %65 = tpu.dynamic_rotate %54 by %c15_i32_48 dim 1 : vector<8x512xf32>, i32 -> vector<8x512xf32>
    %c2_49 = arith.constant 2 : index
    %c0_50 = arith.constant 0 : index
    %c0_51 = arith.constant 0 : index
    %66 = vector.load %arg5[%c2_49, %c0_50, %c0_51] : memref<9x8x512xf32, #tpu.memory_space<vmem>>, vector<1x8x512xf32>
    %67 = vector.shape_cast %66 : vector<1x8x512xf32> to vector<8x512xf32>
    %68 = arith.mulf %65, %67 : vector<8x512xf32>
    %c16_52 = arith.constant 16 : index
    %c0_53 = arith.constant 0 : index
    %69 = vector.load %arg8[%c16_52, %c0_53] : memref<72x512xf32, #tpu.memory_space<vmem>>, vector<8x512xf32>
    tpu.vector_store %arg8[%c16_52, %c0_53], %68 {strides = array<i32>} : memref<72x512xf32, #tpu.memory_space<vmem>>, vector<8x512xf32>,
    %c1_i32_54 = arith.constant 1 : i32
    %70 = tpu.dynamic_rotate %54 by %c1_i32_54 dim 1 : vector<8x512xf32>, i32 -> vector<8x512xf32>
    %c3_55 = arith.constant 3 : index
    %c0_56 = arith.constant 0 : index
    %c0_57 = arith.constant 0 : index
    %71 = vector.load %arg5[%c3_55, %c0_56, %c0_57] : memref<9x8x512xf32, #tpu.memory_space<vmem>>, vector<1x8x512xf32>
    %72 = vector.shape_cast %71 : vector<1x8x512xf32> to vector<8x512xf32>
    %73 = arith.mulf %70, %72 : vector<8x512xf32>
    %c24_58 = arith.constant 24 : index
    %c0_59 = arith.constant 0 : index
    %74 = vector.load %arg8[%c24_58, %c0_59] : memref<72x512xf32, #tpu.memory_space<vmem>>, vector<8x512xf32>
    tpu.vector_store %arg8[%c24_58, %c0_59], %73 {strides = array<i32>} : memref<72x512xf32, #tpu.memory_space<vmem>>, vector<8x512xf32>,
    %c32_60 = arith.constant 32 : index
    %c0_61 = arith.constant 0 : index
    %75 = vector.load %arg8[%c32_60, %c0_61] : memref<72x512xf32, #tpu.memory_space<vmem>>, vector<8x512xf32>
    tpu.vector_store %arg8[%c32_60, %c0_61], %54 {strides = array<i32>} : memref<72x512xf32, #tpu.memory_space<vmem>>, vector<8x512xf32>,
    %c511_i32_62 = arith.constant 511 : i32
    %76 = tpu.dynamic_rotate %54 by %c511_i32_62 dim 1 : vector<8x512xf32>, i32 -> vector<8x512xf32>
    %c5_63 = arith.constant 5 : index
    %c0_64 = arith.constant 0 : index
    %c0_65 = arith.constant 0 : index
    %77 = vector.load %arg5[%c5_63, %c0_64, %c0_65] : memref<9x8x512xf32, #tpu.memory_space<vmem>>, vector<1x8x512xf32>
    %78 = vector.shape_cast %77 : vector<1x8x512xf32> to vector<8x512xf32>
    %79 = arith.mulf %76, %78 : vector<8x512xf32>
    %c40_66 = arith.constant 40 : index
    %c0_67 = arith.constant 0 : index
    %80 = vector.load %arg8[%c40_66, %c0_67] : memref<72x512xf32, #tpu.memory_space<vmem>>, vector<8x512xf32>
    tpu.vector_store %arg8[%c40_66, %c0_67], %79 {strides = array<i32>} : memref<72x512xf32, #tpu.memory_space<vmem>>, vector<8x512xf32>,
    %c497_i32_68 = arith.constant 497 : i32
    %81 = tpu.dynamic_rotate %54 by %c497_i32_68 dim 1 : vector<8x512xf32>, i32 -> vector<8x512xf32>
    %c6_69 = arith.constant 6 : index
    %c0_70 = arith.constant 0 : index
    %c0_71 = arith.constant 0 : index
    %82 = vector.load %arg5[%c6_69, %c0_70, %c0_71] : memref<9x8x512xf32, #tpu.memory_space<vmem>>, vector<1x8x512xf32>
    %83 = vector.shape_cast %82 : vector<1x8x512xf32> to vector<8x512xf32>
    %84 = arith.mulf %81, %83 : vector<8x512xf32>
    %c48_72 = arith.constant 48 : index
    %c0_73 = arith.constant 0 : index
    %85 = vector.load %arg8[%c48_72, %c0_73] : memref<72x512xf32, #tpu.memory_space<vmem>>, vector<8x512xf32>
    tpu.vector_store %arg8[%c48_72, %c0_73], %84 {strides = array<i32>} : memref<72x512xf32, #tpu.memory_space<vmem>>, vector<8x512xf32>,
    %c496_i32_74 = arith.constant 496 : i32
    %86 = tpu.dynamic_rotate %54 by %c496_i32_74 dim 1 : vector<8x512xf32>, i32 -> vector<8x512xf32>
    %c7_75 = arith.constant 7 : index
    %c0_76 = arith.constant 0 : index
    %c0_77 = arith.constant 0 : index
    %87 = vector.load %arg5[%c7_75, %c0_76, %c0_77] : memref<9x8x512xf32, #tpu.memory_space<vmem>>, vector<1x8x512xf32>
    %88 = vector.shape_cast %87 : vector<1x8x512xf32> to vector<8x512xf32>
    %89 = arith.mulf %86, %88 : vector<8x512xf32>
    %c56_78 = arith.constant 56 : index
    %c0_79 = arith.constant 0 : index
    %90 = vector.load %arg8[%c56_78, %c0_79] : memref<72x512xf32, #tpu.memory_space<vmem>>, vector<8x512xf32>
    tpu.vector_store %arg8[%c56_78, %c0_79], %89 {strides = array<i32>} : memref<72x512xf32, #tpu.memory_space<vmem>>, vector<8x512xf32>,
    %c495_i32_80 = arith.constant 495 : i32
    %91 = tpu.dynamic_rotate %54 by %c495_i32_80 dim 1 : vector<8x512xf32>, i32 -> vector<8x512xf32>
    %c8_81 = arith.constant 8 : index
    %c0_82 = arith.constant 0 : index
    %c0_83 = arith.constant 0 : index
    %92 = vector.load %arg5[%c8_81, %c0_82, %c0_83] : memref<9x8x512xf32, #tpu.memory_space<vmem>>, vector<1x8x512xf32>
    %93 = vector.shape_cast %92 : vector<1x8x512xf32> to vector<8x512xf32>
    %94 = arith.mulf %91, %93 : vector<8x512xf32>
    %c64_84 = arith.constant 64 : index
    %c0_85 = arith.constant 0 : index
    %95 = vector.load %arg8[%c64_84, %c0_85] : memref<72x512xf32, #tpu.memory_space<vmem>>, vector<8x512xf32>
    tpu.vector_store %arg8[%c64_84, %c0_85], %94 {strides = array<i32>} : memref<72x512xf32, #tpu.memory_space<vmem>>, vector<8x512xf32>,
    %c0_86 = arith.constant 0 : index
    %c0_87 = arith.constant 0 : index
    %96 = vector.load %arg8[%c0_86, %c0_87] : memref<72x512xf32, #tpu.memory_space<vmem>>, vector<72x512xf32>
    %97 = arith.truncf %96 : vector<72x512xf32> to vector<72x512xbf16>
    %c0_88 = arith.constant 0 : index
    %c0_89 = arith.constant 0 : index
    %98 = vector.load %arg3[%c0_88, %c0_89] : memref<8x72xbf16, #tpu.memory_space<vmem>>, vector<8x72xbf16>
    %cst_90 = arith.constant dense<0.000000e+00> : vector<8x512xf32>
    %99 = tpu.matmul %98, %97, %cst_90 {dimension_numbers = #tpu.dot_dimension_numbers<[1], [0], [0], [1], [0, 0, 1, 1], [], []>} : vector<8x72xbf16>, vector<72x512xbf16>, vector<8x512xf32> -> vector<8x512xf32>
    %c0_91 = arith.constant 0 : index
    %c0_92 = arith.constant 0 : index
    %100 = vector.load %arg4[%c0_91, %c0_92] : memref<8x1xf32, #tpu.memory_space<vmem>>, vector<8x1xf32>
    %101 = vector.broadcast %100 : vector<8x1xf32> to vector<8x512xf32>
    %102 = arith.addf %99, %101 : vector<8x512xf32>
    %cst_93 = arith.constant 0.000000e+00 : f32
    %103 = vector.broadcast %cst_93 : f32 to vector<8x512xf32>
    %104 = arith.cmpf ogt, %102, %103 : vector<8x512xf32>
    %c1_94 = arith.constant 1 : index
    %105 = memref.load %arg6[%c1_94] : memref<2xf32, #tpu.memory_space<smem>>
    %106 = vector.broadcast %105 : f32 to vector<8x512xf32>
    %107 = arith.mulf %106, %102 : vector<8x512xf32>
    %108 = arith.select %104, %102, %107 : vector<8x512xi1>, vector<8x512xf32>
    %109 = arith.addf %108, %48 : vector<8x512xf32>
    %c0_95 = arith.constant 0 : index
    %c0_96 = arith.constant 0 : index
    %c0_97 = arith.constant 0 : index
    %110 = vector.load %arg7[%c0_95, %c0_96, %c0_97] : memref<1x8x512xf32, #tpu.memory_space<vmem>>, vector<1x8x512xf32>
    %111 = vector.shape_cast %110 : vector<1x8x512xf32> to vector<8x512xf32>
    %112 = vector.shape_cast %109 : vector<8x512xf32> to vector<1x8x512xf32>
    tpu.vector_store %arg7[%c0_95, %c0_96, %c0_97], %112 {strides = array<i32>} : memref<1x8x512xf32, #tpu.memory_space<vmem>>, vector<1x8x512xf32>,
    return
  }
  func.func @transform_0(%arg0: i32) -> (i32, i32, i32) {
    %c0_i32 = arith.constant 0 : i32
    %c0_i32_0 = arith.constant 0 : i32
    %c0_i32_1 = arith.constant 0 : i32
    return %arg0, %c0_i32, %c0_i32_0 : i32, i32, i32
  }
  func.func @transform_1(%arg0: i32) -> (i32, i32) {
    %c0_i32 = arith.constant 0 : i32
    %c0_i32_0 = arith.constant 0 : i32
    %c0_i32_1 = arith.constant 0 : i32
    return %c0_i32, %c0_i32_0 : i32, i32
  }
  func.func @transform_2(%arg0: i32) -> (i32, i32) {
    %c0_i32 = arith.constant 0 : i32
    %c0_i32_0 = arith.constant 0 : i32
    %c0_i32_1 = arith.constant 0 : i32
    return %c0_i32, %c0_i32_0 : i32, i32
  }
  func.func @transform_3(%arg0: i32) -> (i32, i32) {
    %c0_i32 = arith.constant 0 : i32
    %c0_i32_0 = arith.constant 0 : i32
    %c0_i32_1 = arith.constant 0 : i32
    return %c0_i32, %c0_i32_0 : i32, i32
  }
  func.func @transform_4(%arg0: i32) -> (i32, i32, i32) {
    %c0_i32 = arith.constant 0 : i32
    %c0_i32_0 = arith.constant 0 : i32
    %c0_i32_1 = arith.constant 0 : i32
    %c0_i32_2 = arith.constant 0 : i32
    return %c0_i32, %c0_i32_0, %c0_i32_1 : i32, i32, i32
  }
  func.func @transform_5(%arg0: i32) -> i32 {
    %c0_i32 = arith.constant 0 : i32
    %c0_i32_0 = arith.constant 0 : i32
    return %c0_i32 : i32
  }
  func.func @transform_6(%arg0: i32) -> (i32, i32, i32) {
    %c0_i32 = arith.constant 0 : i32
    %c0_i32_0 = arith.constant 0 : i32
    %c0_i32_1 = arith.constant 0 : i32
    return %arg0, %c0_i32, %c0_i32_0 : i32, i32, i32
  }
}

</mosaic_0001>

<llo_original>
// kernel: tpu_custom_call.1
$region0: #{tpu_custom_call.1}
  #allocation0 [shape = 'u32[]', space=smem, size = 0x4, offset = 0x4, fixed_abs, tag = 'smem constant byte address 0x4 - core index']
  #allocation1 [shape = 'u32[144,128]{1,0:T(1,128)}', space=vmem, size = 0x12000, scoped, tag = 'internal scratch']
  #allocation2 [shape = 'f32[72,512]{1,0:T(8,128)}', space=vmem, size = 0x24000, scoped, tag = 'scratch operand']
  %s0 = inlined_call_operand.hbm [shape: f32[1,8,512], index: 0, kind: input, shape index: {}]
  %s1 = inlined_call_operand.vmem [shape: bf16[16,72], index: 1, kind: input, shape index: {}]
  %s2 = inlined_call_operand.vmem [shape: bf16[8,72], index: 2, kind: input, shape index: {}]
  %s3 = inlined_call_operand.vmem [shape: f32[8,1], index: 3, kind: input, shape index: {}]
  %s4 = inlined_call_operand.hbm [shape: f32[9,8,512], index: 4, kind: input, shape index: {}]
  %s5 = inlined_call_operand.vmem [shape: f32[2], index: 5, kind: input, shape index: {}]
  %s6 = inlined_call_operand.hbm [shape: f32[1,8,512], index: 6, kind: output, shape index: {}]
  %s7 = sld [smem:[#allocation0]]
  $region46: #{tpu_custom_call.1} parent=0
    _
  %s9 = ssub.s32 1, %s7
  %s10 = scalar_select 0, %s9, %s7
  $region1: #{tpu_custom_call.1} parent=0
    #allocation3 [shape = 'u8[16384]{0}', space=vmem, size = 0x4000, scoped, tag = 'input window, operand 0, single buffered']
    #allocation4 [shape = 's32[1]{0}', space=sflag, size = 0x4, scoped, tag = 'scoped memory for tpu_custom_call.1']
    #allocation5 [shape = 's32[1]{0}', space=sflag, size = 0x4, scoped, tag = 'scoped memory for tpu_custom_call.1']
    #allocation6 [shape = 's32[1]{0}', space=sflag, size = 0x4, scoped, tag = 'scoped memory for tpu_custom_call.1']
    #allocation7 [shape = 'u8[147456]{0}', space=vmem, size = 0x24000, scoped, tag = 'input window, operand 4, single buffered']
    #allocation8 [shape = 's32[1]{0}', space=sflag, size = 0x4, scoped, tag = 'scoped memory for tpu_custom_call.1']
    #allocation9 [shape = 'u8[512]{0}', space=smem, size = 0x200, scoped, tag = 'input window, operand 5, single buffered']
    #allocation10 [shape = 'u8[16384]{0}', space=vmem, size = 0x4000, scoped, tag = 'output window, operand 0, single buffered']
    %11 = vsyncpa [#allocation4], 0
    %12 = vsyncpa [#allocation8], 0
    %13 = vsyncpa [#allocation6], 0
    %14 = vsyncpa [#allocation5], 0
    // Predicated region
    $region2: #{tpu_custom_call.1} parent=1 // pred_check
      _
    $region3: #{tpu_custom_call.1} parent=1 // pred_check_branch
      %16 = sbr.rel (0) target = $region5
    $region4: #{tpu_custom_call.1} parent=1 // pred_region
      %s18 = ssub.s32 512, 512
      %19 = vsyncadd [#allocation4], %s18
      %s21 = sshll.u32 [#allocation3], 4
      %s22 = int_to_ptr.vmem [resolvable:$true] %s21
      %24 = dma.hbm_to_vmem [thread:$0]  %s0, 512, %s22, [#allocation4]
    $region5: #{tpu_custom_call.1} parent=1 // pred_fallthru
      _
    // Predicated region
    $region6: #{tpu_custom_call.1} parent=1 // pred_check
      _
    $region7: #{tpu_custom_call.1} parent=1 // pred_check_branch
      %26 = sbr.rel (0) target = $region9
    $region8: #{tpu_custom_call.1} parent=1 // pred_region
      _
    $region9: #{tpu_custom_call.1} parent=1 // pred_fallthru
      _
    // Predicated region
    $region10: #{tpu_custom_call.1} parent=1 // pred_check
      _
    $region11: #{tpu_custom_call.1} parent=1 // pred_check_branch
      %28 = sbr.rel (0) target = $region13
    $region12: #{tpu_custom_call.1} parent=1 // pred_region
      _
    $region13: #{tpu_custom_call.1} parent=1 // pred_fallthru
      _
    // Predicated region
    $region14: #{tpu_custom_call.1} parent=1 // pred_check
      _
    $region15: #{tpu_custom_call.1} parent=1 // pred_check_branch
      %30 = sbr.rel (0) target = $region17
    $region16: #{tpu_custom_call.1} parent=1 // pred_region
      _
    $region17: #{tpu_custom_call.1} parent=1 // pred_fallthru
      _
    // Predicated region
    $region18: #{tpu_custom_call.1} parent=1 // pred_check
      _
    $region19: #{tpu_custom_call.1} parent=1 // pred_check_branch
      %32 = sbr.rel (0) target = $region21
    $region20: #{tpu_custom_call.1} parent=1 // pred_region
      %s34 = ssub.s32 4608, 4608
      %35 = vsyncadd [#allocation8], %s34
      %s36 = sshll.u32 [#allocation7], 4
      %s37 = int_to_ptr.vmem [resolvable:$true] %s36
      %42 = dma.hbm_to_vmem [thread:$0]  %s4, 4608, %s37, [#allocation8], 512, 512, 32
    $region21: #{tpu_custom_call.1} parent=1 // pred_fallthru
      _
    // Predicated region
    $region22: #{tpu_custom_call.1} parent=1 // pred_check
      _
    $region23: #{tpu_custom_call.1} parent=1 // pred_check_branch
      %44 = sbr.rel (0) target = $region25
    $region24: #{tpu_custom_call.1} parent=1 // pred_region
      %s46 = ssub.s32 16, 16
      %47 = vsyncadd [#allocation6], %s46
      %s49 = sshll.u32 %s5, 4
      %s50 = int_to_ptr.vmem [resolvable:$true] %s49
      %52 = dma.vmem_to_smem %s50, 16, [#allocation9], [#allocation6]
    $region25: #{tpu_custom_call.1} parent=1 // pred_fallthru
      _
    // Predicated region
    $region26: #{tpu_custom_call.1} parent=1 // pred_check
      _
    $region27: #{tpu_custom_call.1} parent=1 // pred_check_branch
      %54 = sbr.rel (0) target = $region29
    $region28: #{tpu_custom_call.1} parent=1 // pred_region
      %55 = dma.done [#allocation4], 512
    $region29: #{tpu_custom_call.1} parent=1 // pred_fallthru
      _
    // Predicated region
    $region30: #{tpu_custom_call.1} parent=1 // pred_check
      _
    $region31: #{tpu_custom_call.1} parent=1 // pred_check_branch
      %57 = sbr.rel (0) target = $region33
    $region32: #{tpu_custom_call.1} parent=1 // pred_region
      %58 = dma.done [#allocation8], 4608
    $region33: #{tpu_custom_call.1} parent=1 // pred_fallthru
      _
    // Predicated region
    $region34: #{tpu_custom_call.1} parent=1 // pred_check
      _
    $region35: #{tpu_custom_call.1} parent=1 // pred_check_branch
      %60 = sbr.rel (0) target = $region37
    $region36: #{tpu_custom_call.1} parent=1 // pred_region
      %61 = dma.done [#allocation6], 16
    $region37: #{tpu_custom_call.1} parent=1 // pred_fallthru
      _
    %62 = sfence
    %v64 = vld [vmem:[#allocation3] sm:$0xff]
    %v65 = vld [vmem:[#allocation3 + $0x8] sm:$0xff]
    %v66 = vld [vmem:[#allocation3 + $0x10] sm:$0xff]
    %v67 = vld [vmem:[#allocation3 + $0x18] sm:$0xff]
    %68 = vrot.lane.b32.xlu0 %v64, 17
    %v69 = vpop.permute.xlu0 %68
    %70 = vrot.lane.b32.xlu0 %v65, 17
    %v71 = vpop.permute.xlu0 %70
    %72 = vrot.lane.b32.xlu0 %v66, 17
    %v73 = vpop.permute.xlu0 %72
    %74 = vrot.lane.b32.xlu0 %v67, 17
    %v75 = vpop.permute.xlu0 %74
    %v76 = vlaneseq
    %v77 = vand.u32 %v76, 127
    %vm78 = vcmp.lt.s32.totalorder %v77, 17
    %v79 = vsel %vm78, %v73, %v75
    %v80 = vsel %vm78, %v71, %v73
    %v81 = vsel %vm78, %v69, %v71
    %v82 = vsel %vm78, %v75, %v69
    %v83 = vld [vmem:[#allocation7] sm:$0xff]
    %v84 = vld [vmem:[#allocation7 + $0x8] sm:$0xff]
    %v85 = vld [vmem:[#allocation7 + $0x10] sm:$0xff]
    %v86 = vld [vmem:[#allocation7 + $0x18] sm:$0xff]
    %v87 = vmul.f32 %v82, %v83
    %v88 = vmul.f32 %v81, %v84
    %v89 = vmul.f32 %v80, %v85
    %v90 = vmul.f32 %v79, %v86
    %91 = vst [vmem:[#allocation2] sm:$0xff] %v87
    %92 = vst [vmem:[#allocation2 + $0x8] sm:$0xff] %v88
    %93 = vst [vmem:[#allocation2 + $0x10] sm:$0xff] %v89
    %94 = vst [vmem:[#allocation2 + $0x18] sm:$0xff] %v90
    %95 = vrot.lane.b32.xlu0 %v64, 16
    %v96 = vpop.permute.xlu0 %95
    %97 = vrot.lane.b32.xlu0 %v65, 16
    %v98 = vpop.permute.xlu0 %97
    %99 = vrot.lane.b32.xlu0 %v66, 16
    %v100 = vpop.permute.xlu0 %99
    %101 = vrot.lane.b32.xlu0 %v67, 16
    %v102 = vpop.permute.xlu0 %101
    %vm103 = vcmp.lt.s32.totalorder %v77, 16
    %v104 = vsel %vm103, %v100, %v102
    %v105 = vsel %vm103, %v98, %v100
    %v106 = vsel %vm103, %v96, %v98
    %v107 = vsel %vm103, %v102, %v96
    %s108 = scalar_lea.vmem [#allocation7], 32
    %v109 = vld [vmem:[%s108] sm:$0xff]
    %v110 = vld [vmem:[%s108 + $0x8] sm:$0xff]
    %v111 = vld [vmem:[%s108 + $0x10] sm:$0xff]
    %v112 = vld [vmem:[%s108 + $0x18] sm:$0xff]
    %v113 = vmul.f32 %v107, %v109
    %v114 = vmul.f32 %v106, %v110
    %v115 = vmul.f32 %v105, %v111
    %v116 = vmul.f32 %v104, %v112
    %117 = vst [vmem:[#allocation2 + $0x20] sm:$0xff] %v113
    %118 = vst [vmem:[#allocation2 + $0x28] sm:$0xff] %v114
    %119 = vst [vmem:[#allocation2 + $0x30] sm:$0xff] %v115
    %120 = vst [vmem:[#allocation2 + $0x38] sm:$0xff] %v116
    %121 = vrot.lane.b32.xlu0 %v64, 15
    %v122 = vpop.permute.xlu0 %121
    %123 = vrot.lane.b32.xlu0 %v65, 15
    %v124 = vpop.permute.xlu0 %123
    %125 = vrot.lane.b32.xlu0 %v66, 15
    %v126 = vpop.permute.xlu0 %125
    %127 = vrot.lane.b32.xlu0 %v67, 15
    %v128 = vpop.permute.xlu0 %127
    %vm129 = vcmp.lt.s32.totalorder %v77, 15
    %v130 = vsel %vm129, %v126, %v128
    %v131 = vsel %vm129, %v124, %v126
    %v132 = vsel %vm129, %v122, %v124
    %v133 = vsel %vm129, %v128, %v122
    %s134 = scalar_lea.vmem [#allocation7], 64
    %v135 = vld [vmem:[%s134] sm:$0xff]
    %v136 = vld [vmem:[%s134 + $0x8] sm:$0xff]
    %v137 = vld [vmem:[%s134 + $0x10] sm:$0xff]
    %v138 = vld [vmem:[%s134 + $0x18] sm:$0xff]
    %v139 = vmul.f32 %v133, %v135
    %v140 = vmul.f32 %v132, %v136
    %v141 = vmul.f32 %v131, %v137
    %v142 = vmul.f32 %v130, %v138
    %143 = vst [vmem:[#allocation2 + $0x40] sm:$0xff] %v139
    %144 = vst [vmem:[#allocation2 + $0x48] sm:$0xff] %v140
    %145 = vst [vmem:[#allocation2 + $0x50] sm:$0xff] %v141
    %146 = vst [vmem:[#allocation2 + $0x58] sm:$0xff] %v142
    %147 = vrot.lane.b32.xlu0 %v64, 1
    %v148 = vpop.permute.xlu0 %147
    %149 = vrot.lane.b32.xlu0 %v65, 1
    %v150 = vpop.permute.xlu0 %149
    %151 = vrot.lane.b32.xlu0 %v66, 1
    %v152 = vpop.permute.xlu0 %151
    %153 = vrot.lane.b32.xlu0 %v67, 1
    %v154 = vpop.permute.xlu0 %153
    %vm155 = vcmp.lt.s32.totalorder %v77, 1
    %v156 = vsel %vm155, %v152, %v154
    %v157 = vsel %vm155, %v150, %v152
    %v158 = vsel %vm155, %v148, %v150
    %v159 = vsel %vm155, %v154, %v148
    %s160 = scalar_lea.vmem [#allocation7], 96
    %v161 = vld [vmem:[%s160] sm:$0xff]
    %v162 = vld [vmem:[%s160 + $0x8] sm:$0xff]
    %v163 = vld [vmem:[%s160 + $0x10] sm:$0xff]
    %v164 = vld [vmem:[%s160 + $0x18] sm:$0xff]
    %v165 = vmul.f32 %v159, %v161
    %v166 = vmul.f32 %v158, %v162
    %v167 = vmul.f32 %v157, %v163
    %v168 = vmul.f32 %v156, %v164
    %169 = vst [vmem:[#allocation2 + $0x60] sm:$0xff] %v165
    %170 = vst [vmem:[#allocation2 + $0x68] sm:$0xff] %v166
    %171 = vst [vmem:[#allocation2 + $0x70] sm:$0xff] %v167
    %172 = vst [vmem:[#allocation2 + $0x78] sm:$0xff] %v168
    %173 = vst [vmem:[#allocation2 + $0x80] sm:$0xff] %v64
    %174 = vst [vmem:[#allocation2 + $0x88] sm:$0xff] %v65
    %175 = vst [vmem:[#allocation2 + $0x90] sm:$0xff] %v66
    %176 = vst [vmem:[#allocation2 + $0x98] sm:$0xff] %v67
    %177 = vrot.lane.b32.xlu0 %v64, 127
    %v178 = vpop.permute.xlu0 %177
    %179 = vrot.lane.b32.xlu0 %v65, 127
    %v180 = vpop.permute.xlu0 %179
    %181 = vrot.lane.b32.xlu0 %v66, 127
    %v182 = vpop.permute.xlu0 %181
    %183 = vrot.lane.b32.xlu0 %v67, 127
    %v184 = vpop.permute.xlu0 %183
    %vm185 = vcmp.lt.s32.totalorder %v77, 127
    %v186 = vsel %vm185, %v182, %v184
    %v187 = vsel %vm185, %v180, %v182
    %v188 = vsel %vm185, %v178, %v180
    %v189 = vsel %vm185, %v184, %v178
    %s190 = scalar_lea.vmem [#allocation7], 160
    %v191 = vld [vmem:[%s190] sm:$0xff]
    %v192 = vld [vmem:[%s190 + $0x8] sm:$0xff]
    %v193 = vld [vmem:[%s190 + $0x10] sm:$0xff]
    %v194 = vld [vmem:[%s190 + $0x18] sm:$0xff]
    %v195 = vmul.f32 %v188, %v191
    %v196 = vmul.f32 %v187, %v192
    %v197 = vmul.f32 %v186, %v193
    %v198 = vmul.f32 %v189, %v194
    %199 = vst [vmem:[#allocation2 + $0xa0] sm:$0xff] %v195
    %200 = vst [vmem:[#allocation2 + $0xa8] sm:$0xff] %v196
    %201 = vst [vmem:[#allocation2 + $0xb0] sm:$0xff] %v197
    %202 = vst [vmem:[#allocation2 + $0xb8] sm:$0xff] %v198
    %203 = vrot.lane.b32.xlu0 %v64, 113
    %v204 = vpop.permute.xlu0 %203
    %205 = vrot.lane.b32.xlu0 %v65, 113
    %v206 = vpop.permute.xlu0 %205
    %207 = vrot.lane.b32.xlu0 %v66, 113
    %v208 = vpop.permute.xlu0 %207
    %209 = vrot.lane.b32.xlu0 %v67, 113
    %v210 = vpop.permute.xlu0 %209
    %vm211 = vcmp.lt.s32.totalorder %v77, 113
    %v212 = vsel %vm211, %v208, %v210
    %v213 = vsel %vm211, %v206, %v208
    %v214 = vsel %vm211, %v204, %v206
    %v215 = vsel %vm211, %v210, %v204
    %s216 = scalar_lea.vmem [#allocation7], 192
    %v217 = vld [vmem:[%s216] sm:$0xff]
    %v218 = vld [vmem:[%s216 + $0x8] sm:$0xff]
    %v219 = vld [vmem:[%s216 + $0x10] sm:$0xff]
    %v220 = vld [vmem:[%s216 + $0x18] sm:$0xff]
    %v221 = vmul.f32 %v214, %v217
    %v222 = vmul.f32 %v213, %v218
    %v223 = vmul.f32 %v212, %v219
    %v224 = vmul.f32 %v215, %v220
    %225 = vst [vmem:[#allocation2 + $0xc0] sm:$0xff] %v221
    %226 = vst [vmem:[#allocation2 + $0xc8] sm:$0xff] %v222
    %227 = vst [vmem:[#allocation2 + $0xd0] sm:$0xff] %v223
    %228 = vst [vmem:[#allocation2 + $0xd8] sm:$0xff] %v224
    %229 = vrot.lane.b32.xlu0 %v64, 112
    %v230 = vpop.permute.xlu0 %229
    %231 = vrot.lane.b32.xlu0 %v65, 112
    %v232 = vpop.permute.xlu0 %231
    %233 = vrot.lane.b32.xlu0 %v66, 112
    %v234 = vpop.permute.xlu0 %233
    %235 = vrot.lane.b32.xlu0 %v67, 112
    %v236 = vpop.permute.xlu0 %235
    %vm237 = vcmp.lt.s32.totalorder %v77, 112
    %v238 = vsel %vm237, %v234, %v236
    %v239 = vsel %vm237, %v232, %v234
    %v240 = vsel %vm237, %v230, %v232
    %v241 = vsel %vm237, %v236, %v230
    %s242 = scalar_lea.vmem [#allocation7], 224
    %v243 = vld [vmem:[%s242] sm:$0xff]
    %v244 = vld [vmem:[%s242 + $0x8] sm:$0xff]
    %v245 = vld [vmem:[%s242 + $0x10] sm:$0xff]
    %v246 = vld [vmem:[%s242 + $0x18] sm:$0xff]
    %v247 = vmul.f32 %v240, %v243
    %v248 = vmul.f32 %v239, %v244
    %v249 = vmul.f32 %v238, %v245
    %v250 = vmul.f32 %v241, %v246
    %251 = vst [vmem:[#allocation2 + $0xe0] sm:$0xff] %v247
    %252 = vst [vmem:[#allocation2 + $0xe8] sm:$0xff] %v248
    %253 = vst [vmem:[#allocation2 + $0xf0] sm:$0xff] %v249
    %254 = vst [vmem:[#allocation2 + $0xf8] sm:$0xff] %v250
    %255 = vrot.lane.b32.xlu0 %v64, 111
    %v256 = vpop.permute.xlu0 %255
    %257 = vrot.lane.b32.xlu0 %v65, 111
    %v258 = vpop.permute.xlu0 %257
    %259 = vrot.lane.b32.xlu0 %v66, 111
    %v260 = vpop.permute.xlu0 %259
    %261 = vrot.lane.b32.xlu0 %v67, 111
    %v262 = vpop.permute.xlu0 %261
    %vm263 = vcmp.lt.s32.totalorder %v77, 111
    %v264 = vsel %vm263, %v260, %v262
    %v265 = vsel %vm263, %v258, %v260
    %v266 = vsel %vm263, %v256, %v258
    %v267 = vsel %vm263, %v262, %v256
    %s268 = scalar_lea.vmem [#allocation7], 256
    %v269 = vld [vmem:[%s268] sm:$0xff]
    %v270 = vld [vmem:[%s268 + $0x8] sm:$0xff]
    %v271 = vld [vmem:[%s268 + $0x10] sm:$0xff]
    %v272 = vld [vmem:[%s268 + $0x18] sm:$0xff]
    %v273 = vmul.f32 %v266, %v269
    %v274 = vmul.f32 %v265, %v270
    %v275 = vmul.f32 %v264, %v271
    %v276 = vmul.f32 %v267, %v272
    %277 = vst [vmem:[#allocation2 + $0x100] sm:$0xff] %v273
    %278 = vst [vmem:[#allocation2 + $0x108] sm:$0xff] %v274
    %279 = vst [vmem:[#allocation2 + $0x110] sm:$0xff] %v275
    %280 = vst [vmem:[#allocation2 + $0x118] sm:$0xff] %v276
    %v281 = vld [vmem:[#allocation2] sm:$0xff]
    %v282 = vld [vmem:[#allocation2 + $0x8] sm:$0xff]
    %v283 = vld [vmem:[#allocation2 + $0x10] sm:$0xff]
    %v284 = vld [vmem:[#allocation2 + $0x18] sm:$0xff]
    %v285 = vld [vmem:[#allocation2 + $0x20] sm:$0xff]
    %v286 = vld [vmem:[#allocation2 + $0x28] sm:$0xff]
    %v287 = vld [vmem:[#allocation2 + $0x30] sm:$0xff]
    %v288 = vld [vmem:[#allocation2 + $0x38] sm:$0xff]
    %v289 = vld [vmem:[#allocation2 + $0x40] sm:$0xff]
    %v290 = vld [vmem:[#allocation2 + $0x48] sm:$0xff]
    %v291 = vld [vmem:[#allocation2 + $0x50] sm:$0xff]
    %v292 = vld [vmem:[#allocation2 + $0x58] sm:$0xff]
    %v293 = vld [vmem:[#allocation2 + $0x60] sm:$0xff]
    %v294 = vld [vmem:[#allocation2 + $0x68] sm:$0xff]
    %v295 = vld [vmem:[#allocation2 + $0x70] sm:$0xff]
    %v296 = vld [vmem:[#allocation2 + $0x78] sm:$0xff]
    %v297 = vld [vmem:[#allocation2 + $0x80] sm:$0xff]
    %v298 = vld [vmem:[#allocation2 + $0x88] sm:$0xff]
    %v299 = vld [vmem:[#allocation2 + $0x90] sm:$0xff]
    %v300 = vld [vmem:[#allocation2 + $0x98] sm:$0xff]
    %v301 = vld [vmem:[#allocation2 + $0xa0] sm:$0xff]
    %v302 = vld [vmem:[#allocation2 + $0xa8] sm:$0xff]
    %v303 = vld [vmem:[#allocation2 + $0xb0] sm:$0xff]
    %v304 = vld [vmem:[#allocation2 + $0xb8] sm:$0xff]
    %v305 = vld [vmem:[#allocation2 + $0xc0] sm:$0xff]
    %v306 = vld [vmem:[#allocation2 + $0xc8] sm:$0xff]
    %v307 = vld [vmem:[#allocation2 + $0xd0] sm:$0xff]
    %v308 = vld [vmem:[#allocation2 + $0xd8] sm:$0xff]
    %v309 = vld [vmem:[#allocation2 + $0xe0] sm:$0xff]
    %v310 = vld [vmem:[#allocation2 + $0xe8] sm:$0xff]
    %v311 = vld [vmem:[#allocation2 + $0xf0] sm:$0xff]
    %v312 = vld [vmem:[#allocation2 + $0xf8] sm:$0xff]
    %v313 = vld [vmem:[#allocation2 + $0x100] sm:$0xff]
    %v314 = vld [vmem:[#allocation2 + $0x108] sm:$0xff]
    %v315 = vld [vmem:[#allocation2 + $0x110] sm:$0xff]
    %v316 = vld [vmem:[#allocation2 + $0x118] sm:$0xff]
    %v317 = vpack.c.bf16 %v285, %v281
    %v318 = vpack.c.bf16 %v286, %v282
    %v319 = vpack.c.bf16 %v287, %v283
    %v320 = vpack.c.bf16 %v288, %v284
    %v321 = vpack.c.bf16 %v293, %v289
    %v322 = vpack.c.bf16 %v294, %v290
    %v323 = vpack.c.bf16 %v295, %v291
    %v324 = vpack.c.bf16 %v296, %v292
    %v325 = vpack.c.bf16 %v301, %v297
    %v326 = vpack.c.bf16 %v302, %v298
    %v327 = vpack.c.bf16 %v303, %v299
    %v328 = vpack.c.bf16 %v304, %v300
    %v329 = vpack.c.bf16 %v309, %v305
    %v330 = vpack.c.bf16 %v310, %v306
    %v331 = vpack.c.bf16 %v311, %v307
    %v332 = vpack.c.bf16 %v312, %v308
    %v333 = vpack.c.bf16 %v313, %v313
    %v334 = vpack.c.bf16 %v314, %v314
    %v335 = vpack.c.bf16 %v315, %v315
    %v336 = vpack.c.bf16 %v316, %v316
    %v337 = vld [vmem:[%s1] sm:$0xf]
    %v338 = vld [vmem:[%s1 + $0x4] sm:$0xf]
    %v341 = vunpack.c.l.b16 %v337
    %v342 = vunpack.c.l.b16 %v338
    %v343 = vpack.c.b16 %v342, %v341
    %vm344 = vcmask 588800
    %v346 = vsel %vm344, %v343, 0
    %vm348 = vcmask 1043456
    %v350 = vsel %vm348, %v333, 0
    %v353 = vsel %vm348, %v334, 0
    %v356 = vsel %vm348, %v335, 0
    %v359 = vsel %vm348, %v336, 0
    %361 = vmatprep.subr.bf16.mxu0 0
    %362 = vmatpush1.bf16.msra.mxu0 0
    %363 = vmatprep.subr.bf16.mxu0 0
    %364 = vmatpush1.bf16.msra.mxu0 0
    %365 = vmatprep.subr.bf16.mxu0 0
    %366 = vmatpush1.bf16.msra.mxu0 0
    %367 = vmatprep.subr.bf16.mxu0 %v353
    %368 = vmatpush1.bf16.msra.mxu0 %v350
    %369 = vmatprep.subr.bf16.mxu0 %v330
    %370 = vmatpush1.bf16.msra.mxu0 %v329
    %371 = vmatprep.subr.bf16.mxu0 %v326
    %372 = vmatpush1.bf16.msra.mxu0 %v325
    %373 = vmatprep.subr.bf16.mxu0 %v322
    %374 = vmatpush1.bf16.msra.mxu0 %v321
    %375 = vmatprep.subr.bf16.mxu0 %v318
    %376 = vmatpush1.bf16.msra.mxu0 %v317
    %377 = vmatprep.subr.bf16.mxu0 0
    %378 = vmatpush2.bf16.msra.mxu0 0
    %379 = vmatprep.subr.bf16.mxu0 0
    %380 = vmatpush2.bf16.msra.mxu0 0
    %381 = vmatprep.subr.bf16.mxu0 0
    %382 = vmatpush2.bf16.msra.mxu0 0
    %383 = vmatprep.subr.bf16.mxu0 0
    %384 = vmatpush2.bf16.msra.mxu0 0
    %385 = vmatprep.subr.bf16.mxu0 0
    %386 = vmatpush2.bf16.msra.mxu0 0
    %387 = vmatprep.subr.bf16.mxu0 0
    %388 = vmatpush2.bf16.msra.mxu0 0
    %389 = vmatprep.subr.bf16.mxu0 0
    %390 = vmatpush2.bf16.msra.mxu0 0
    %391 = vmatprep.subr.bf16.mxu0 0
    %392 = vmatpush2.bf16.msra.mxu0 0
    %393 = vmatprep.mubr.bf16.mxu0 0
    %394 = vmatmul.mubr.bf16.gmra.mxu0 %v346
    %v395 = vpop.f32.mrf.mxu0
    %v396 = vadd.f32 0.0, %v395
    %v397 = vpop.f32.mrf.mxu0
    %v398 = vadd.f32 0.0, %v397
    %v399 = vpop.f32.mrf.mxu0
    %v400 = vadd.f32 0.0, %v399
    %v401 = vpop.f32.mrf.mxu0
    %v402 = vadd.f32 0.0, %v401
    %403 = vdwg.mxu0
    %404 = vmatprep.subr.bf16.mxu0 0
    %405 = vmatpush1.bf16.msra.mxu0 0
    %406 = vmatprep.subr.bf16.mxu0 0
    %407 = vmatpush1.bf16.msra.mxu0 0
    %408 = vmatprep.subr.bf16.mxu0 0
    %409 = vmatpush1.bf16.msra.mxu0 0
    %410 = vmatprep.subr.bf16.mxu0 %v359
    %411 = vmatpush1.bf16.msra.mxu0 %v356
    %412 = vmatprep.subr.bf16.mxu0 %v332
    %413 = vmatpush1.bf16.msra.mxu0 %v331
    %414 = vmatprep.subr.bf16.mxu0 %v328
    %415 = vmatpush1.bf16.msra.mxu0 %v327
    %416 = vmatprep.subr.bf16.mxu0 %v324
    %417 = vmatpush1.bf16.msra.mxu0 %v323
    %418 = vmatprep.subr.bf16.mxu0 %v320
    %419 = vmatpush1.bf16.msra.mxu0 %v319
    %420 = vmatprep.subr.bf16.mxu0 0
    %421 = vmatpush2.bf16.msra.mxu0 0
    %422 = vmatprep.subr.bf16.mxu0 0
    %423 = vmatpush2.bf16.msra.mxu0 0
    %424 = vmatprep.subr.bf16.mxu0 0
    %425 = vmatpush2.bf16.msra.mxu0 0
    %426 = vmatprep.subr.bf16.mxu0 0
    %427 = vmatpush2.bf16.msra.mxu0 0
    %428 = vmatprep.subr.bf16.mxu0 0
    %429 = vmatpush2.bf16.msra.mxu0 0
    %430 = vmatprep.subr.bf16.mxu0 0
    %431 = vmatpush2.bf16.msra.mxu0 0
    %432 = vmatprep.subr.bf16.mxu0 0
    %433 = vmatpush2.bf16.msra.mxu0 0
    %434 = vmatprep.subr.bf16.mxu0 0
    %435 = vmatpush2.bf16.msra.mxu0 0
    %436 = vmatprep.mubr.bf16.mxu0 0
    %437 = vmatmul.mubr.bf16.gmra.mxu0 %v346
    %v438 = vpop.f32.mrf.mxu0
    %v439 = vadd.f32 0.0, %v438
    %v440 = vpop.f32.mrf.mxu0
    %v441 = vadd.f32 0.0, %v440
    %v442 = vpop.f32.mrf.mxu0
    %v443 = vadd.f32 0.0, %v442
    %v444 = vpop.f32.mrf.mxu0
    %v445 = vadd.f32 0.0, %v444
    %446 = vdwg.mxu0
    %vm447 = vcmp.gt.f32.partialorder %v396, 0.0
    %vm448 = vcmp.gt.f32.partialorder %v398, 0.0
    %vm449 = vcmp.gt.f32.partialorder %v439, 0.0
    %vm450 = vcmp.gt.f32.partialorder %v441, 0.0
    %s451 = sld [smem:[#allocation9]]
    %v452 = vstv %s451
    %v453 = vmul.f32 %v452, %v396
    %v454 = vmul.f32 %v452, %v398
    %v455 = vmul.f32 %v452, %v439
    %v456 = vmul.f32 %v452, %v441
    %v457 = vsel %vm447, %v396, %v453
    %v458 = vsel %vm448, %v398, %v454
    %v459 = vsel %vm449, %v439, %v455
    %v460 = vsel %vm450, %v441, %v456
    %461 = vrot.lane.b32.xlu0 %v457, 17
    %v462 = vpop.permute.xlu0 %461
    %463 = vrot.lane.b32.xlu0 %v458, 17
    %v464 = vpop.permute.xlu0 %463
    %465 = vrot.lane.b32.xlu0 %v459, 17
    %v466 = vpop.permute.xlu0 %465
    %467 = vrot.lane.b32.xlu0 %v460, 17
    %v468 = vpop.permute.xlu0 %467
    %v469 = vsel %vm78, %v466, %v468
    %v470 = vsel %vm78, %v464, %v466
    %v471 = vsel %vm78, %v462, %v464
    %v472 = vsel %vm78, %v468, %v462
    %v473 = vld [vmem:[#allocation7] sm:$0xff]
    %v474 = vld [vmem:[#allocation7 + $0x8] sm:$0xff]
    %v475 = vld [vmem:[#allocation7 + $0x10] sm:$0xff]
    %v476 = vld [vmem:[#allocation7 + $0x18] sm:$0xff]
    %v477 = vmul.f32 %v472, %v473
    %v478 = vmul.f32 %v471, %v474
    %v479 = vmul.f32 %v470, %v475
    %v480 = vmul.f32 %v469, %v476
    %481 = vst [vmem:[#allocation2] sm:$0xff] %v477
    %482 = vst [vmem:[#allocation2 + $0x8] sm:$0xff] %v478
    %483 = vst [vmem:[#allocation2 + $0x10] sm:$0xff] %v479
    %484 = vst [vmem:[#allocation2 + $0x18] sm:$0xff] %v480
    %485 = vrot.lane.b32.xlu0 %v457, 16
    %v486 = vpop.permute.xlu0 %485
    %487 = vrot.lane.b32.xlu0 %v458, 16
    %v488 = vpop.permute.xlu0 %487
    %489 = vrot.lane.b32.xlu0 %v459, 16
    %v490 = vpop.permute.xlu0 %489
    %491 = vrot.lane.b32.xlu0 %v460, 16
    %v492 = vpop.permute.xlu0 %491
    %v493 = vsel %vm103, %v490, %v492
    %v494 = vsel %vm103, %v488, %v490
    %v495 = vsel %vm103, %v486, %v488
    %v496 = vsel %vm103, %v492, %v486
    %v497 = vld [vmem:[%s108] sm:$0xff]
    %v498 = vld [vmem:[%s108 + $0x8] sm:$0xff]
    %v499 = vld [vmem:[%s108 + $0x10] sm:$0xff]
    %v500 = vld [vmem:[%s108 + $0x18] sm:$0xff]
    %v501 = vmul.f32 %v496, %v497
    %v502 = vmul.f32 %v495, %v498
    %v503 = vmul.f32 %v494, %v499
    %v504 = vmul.f32 %v493, %v500
    %505 = vst [vmem:[#allocation2 + $0x20] sm:$0xff] %v501
    %506 = vst [vmem:[#allocation2 + $0x28] sm:$0xff] %v502
    %507 = vst [vmem:[#allocation2 + $0x30] sm:$0xff] %v503
    %508 = vst [vmem:[#allocation2 + $0x38] sm:$0xff] %v504
    %509 = vrot.lane.b32.xlu0 %v457, 15
    %v510 = vpop.permute.xlu0 %509
    %511 = vrot.lane.b32.xlu0 %v458, 15
    %v512 = vpop.permute.xlu0 %511
    %513 = vrot.lane.b32.xlu0 %v459, 15
    %v514 = vpop.permute.xlu0 %513
    %515 = vrot.lane.b32.xlu0 %v460, 15
    %v516 = vpop.permute.xlu0 %515
    %v517 = vsel %vm129, %v514, %v516
    %v518 = vsel %vm129, %v512, %v514
    %v519 = vsel %vm129, %v510, %v512
    %v520 = vsel %vm129, %v516, %v510
    %v521 = vld [vmem:[%s134] sm:$0xff]
    %v522 = vld [vmem:[%s134 + $0x8] sm:$0xff]
    %v523 = vld [vmem:[%s134 + $0x10] sm:$0xff]
    %v524 = vld [vmem:[%s134 + $0x18] sm:$0xff]
    %v525 = vmul.f32 %v520, %v521
    %v526 = vmul.f32 %v519, %v522
    %v527 = vmul.f32 %v518, %v523
    %v528 = vmul.f32 %v517, %v524
    %529 = vst [vmem:[#allocation2 + $0x40] sm:$0xff] %v525
    %530 = vst [vmem:[#allocation2 + $0x48] sm:$0xff] %v526
    %531 = vst [vmem:[#allocation2 + $0x50] sm:$0xff] %v527
    %532 = vst [vmem:[#allocation2 + $0x58] sm:$0xff] %v528
    %533 = vrot.lane.b32.xlu0 %v457, 1
    %v534 = vpop.permute.xlu0 %533
    %535 = vrot.lane.b32.xlu0 %v458, 1
    %v536 = vpop.permute.xlu0 %535
    %537 = vrot.lane.b32.xlu0 %v459, 1
    %v538 = vpop.permute.xlu0 %537
    %539 = vrot.lane.b32.xlu0 %v460, 1
    %v540 = vpop.permute.xlu0 %539
    %v541 = vsel %vm155, %v538, %v540
    %v542 = vsel %vm155, %v536, %v538
    %v543 = vsel %vm155, %v534, %v536
    %v544 = vsel %vm155, %v540, %v534
    %v545 = vld [vmem:[%s160] sm:$0xff]
    %v546 = vld [vmem:[%s160 + $0x8] sm:$0xff]
    %v547 = vld [vmem:[%s160 + $0x10] sm:$0xff]
    %v548 = vld [vmem:[%s160 + $0x18] sm:$0xff]
    %v549 = vmul.f32 %v544, %v545
    %v550 = vmul.f32 %v543, %v546
    %v551 = vmul.f32 %v542, %v547
    %v552 = vmul.f32 %v541, %v548
    %553 = vst [vmem:[#allocation2 + $0x60] sm:$0xff] %v549
    %554 = vst [vmem:[#allocation2 + $0x68] sm:$0xff] %v550
    %555 = vst [vmem:[#allocation2 + $0x70] sm:$0xff] %v551
    %556 = vst [vmem:[#allocation2 + $0x78] sm:$0xff] %v552
    %557 = vst [vmem:[#allocation2 + $0x80] sm:$0xff] %v457
    %558 = vst [vmem:[#allocation2 + $0x88] sm:$0xff] %v458
    %559 = vst [vmem:[#allocation2 + $0x90] sm:$0xff] %v459
    %560 = vst [vmem:[#allocation2 + $0x98] sm:$0xff] %v460
    %561 = vrot.lane.b32.xlu0 %v457, 127
    %v562 = vpop.permute.xlu0 %561
    %563 = vrot.lane.b32.xlu0 %v458, 127
    %v564 = vpop.permute.xlu0 %563
    %565 = vrot.lane.b32.xlu0 %v459, 127
    %v566 = vpop.permute.xlu0 %565
    %567 = vrot.lane.b32.xlu0 %v460, 127
    %v568 = vpop.permute.xlu0 %567
    %v569 = vsel %vm185, %v566, %v568
    %v570 = vsel %vm185, %v564, %v566
    %v571 = vsel %vm185, %v562, %v564
    %v572 = vsel %vm185, %v568, %v562
    %v573 = vld [vmem:[%s190] sm:$0xff]
    %v574 = vld [vmem:[%s190 + $0x8] sm:$0xff]
    %v575 = vld [vmem:[%s190 + $0x10] sm:$0xff]
    %v576 = vld [vmem:[%s190 + $0x18] sm:$0xff]
    %v577 = vmul.f32 %v571, %v573
    %v578 = vmul.f32 %v570, %v574
    %v579 = vmul.f32 %v569, %v575
    %v580 = vmul.f32 %v572, %v576
    %581 = vst [vmem:[#allocation2 + $0xa0] sm:$0xff] %v577
    %582 = vst [vmem:[#allocation2 + $0xa8] sm:$0xff] %v578
    %583 = vst [vmem:[#allocation2 + $0xb0] sm:$0xff] %v579
    %584 = vst [vmem:[#allocation2 + $0xb8] sm:$0xff] %v580
    %585 = vrot.lane.b32.xlu0 %v457, 113
    %v586 = vpop.permute.xlu0 %585
    %587 = vrot.lane.b32.xlu0 %v458, 113
    %v588 = vpop.permute.xlu0 %587
    %589 = vrot.lane.b32.xlu0 %v459, 113
    %v590 = vpop.permute.xlu0 %589
    %591 = vrot.lane.b32.xlu0 %v460, 113
    %v592 = vpop.permute.xlu0 %591
    %v593 = vsel %vm211, %v590, %v592
    %v594 = vsel %vm211, %v588, %v590
    %v595 = vsel %vm211, %v586, %v588
    %v596 = vsel %vm211, %v592, %v586
    %v597 = vld [vmem:[%s216] sm:$0xff]
    %v598 = vld [vmem:[%s216 + $0x8] sm:$0xff]
    %v599 = vld [vmem:[%s216 + $0x10] sm:$0xff]
    %v600 = vld [vmem:[%s216 + $0x18] sm:$0xff]
    %v601 = vmul.f32 %v595, %v597
    %v602 = vmul.f32 %v594, %v598
    %v603 = vmul.f32 %v593, %v599
    %v604 = vmul.f32 %v596, %v600
    %605 = vst [vmem:[#allocation2 + $0xc0] sm:$0xff] %v601
    %606 = vst [vmem:[#allocation2 + $0xc8] sm:$0xff] %v602
    %607 = vst [vmem:[#allocation2 + $0xd0] sm:$0xff] %v603
    %608 = vst [vmem:[#allocation2 + $0xd8] sm:$0xff] %v604
    %609 = vrot.lane.b32.xlu0 %v457, 112
    %v610 = vpop.permute.xlu0 %609
    %611 = vrot.lane.b32.xlu0 %v458, 112
    %v612 = vpop.permute.xlu0 %611
    %613 = vrot.lane.b32.xlu0 %v459, 112
    %v614 = vpop.permute.xlu0 %613
    %615 = vrot.lane.b32.xlu0 %v460, 112
    %v616 = vpop.permute.xlu0 %615
    %v617 = vsel %vm237, %v614, %v616
    %v618 = vsel %vm237, %v612, %v614
    %v619 = vsel %vm237, %v610, %v612
    %v620 = vsel %vm237, %v616, %v610
    %v621 = vld [vmem:[%s242] sm:$0xff]
    %v622 = vld [vmem:[%s242 + $0x8] sm:$0xff]
    %v623 = vld [vmem:[%s242 + $0x10] sm:$0xff]
    %v624 = vld [vmem:[%s242 + $0x18] sm:$0xff]
    %v625 = vmul.f32 %v619, %v621
    %v626 = vmul.f32 %v618, %v622
    %v627 = vmul.f32 %v617, %v623
    %v628 = vmul.f32 %v620, %v624
    %629 = vst [vmem:[#allocation2 + $0xe0] sm:$0xff] %v625
    %630 = vst [vmem:[#allocation2 + $0xe8] sm:$0xff] %v626
    %631 = vst [vmem:[#allocation2 + $0xf0] sm:$0xff] %v627
    %632 = vst [vmem:[#allocation2 + $0xf8] sm:$0xff] %v628
    %633 = vrot.lane.b32.xlu0 %v457, 111
    %v634 = vpop.permute.xlu0 %633
    %635 = vrot.lane.b32.xlu0 %v458, 111
    %v636 = vpop.permute.xlu0 %635
    %637 = vrot.lane.b32.xlu0 %v459, 111
    %v638 = vpop.permute.xlu0 %637
    %639 = vrot.lane.b32.xlu0 %v460, 111
    %v640 = vpop.permute.xlu0 %639
    %v641 = vsel %vm263, %v638, %v640
    %v642 = vsel %vm263, %v636, %v638
    %v643 = vsel %vm263, %v634, %v636
    %v644 = vsel %vm263, %v640, %v634
    %v645 = vld [vmem:[%s268] sm:$0xff]
    %v646 = vld [vmem:[%s268 + $0x8] sm:$0xff]
    %v647 = vld [vmem:[%s268 + $0x10] sm:$0xff]
    %v648 = vld [vmem:[%s268 + $0x18] sm:$0xff]
    %v649 = vmul.f32 %v643, %v645
    %v650 = vmul.f32 %v642, %v646
    %v651 = vmul.f32 %v641, %v647
    %v652 = vmul.f32 %v644, %v648
    %653 = vst [vmem:[#allocation2 + $0x100] sm:$0xff] %v649
    %654 = vst [vmem:[#allocation2 + $0x108] sm:$0xff] %v650
    %655 = vst [vmem:[#allocation2 + $0x110] sm:$0xff] %v651
    %656 = vst [vmem:[#allocation2 + $0x118] sm:$0xff] %v652
    %v657 = vld [vmem:[#allocation2] sm:$0xff]
    %v658 = vld [vmem:[#allocation2 + $0x8] sm:$0xff]
    %v659 = vld [vmem:[#allocation2 + $0x10] sm:$0xff]
    %v660 = vld [vmem:[#allocation2 + $0x18] sm:$0xff]
    %v661 = vld [vmem:[#allocation2 + $0x20] sm:$0xff]
    %v662 = vld [vmem:[#allocation2 + $0x28] sm:$0xff]
    %v663 = vld [vmem:[#allocation2 + $0x30] sm:$0xff]
    %v664 = vld [vmem:[#allocation2 + $0x38] sm:$0xff]
    %v665 = vld [vmem:[#allocation2 + $0x40] sm:$0xff]
    %v666 = vld [vmem:[#allocation2 + $0x48] sm:$0xff]
    %v667 = vld [vmem:[#allocation2 + $0x50] sm:$0xff]
    %v668 = vld [vmem:[#allocation2 + $0x58] sm:$0xff]
    %v669 = vld [vmem:[#allocation2 + $0x60] sm:$0xff]
    %v670 = vld [vmem:[#allocation2 + $0x68] sm:$0xff]
    %v671 = vld [vmem:[#allocation2 + $0x70] sm:$0xff]
    %v672 = vld [vmem:[#allocation2 + $0x78] sm:$0xff]
    %v673 = vld [vmem:[#allocation2 + $0x80] sm:$0xff]
    %v674 = vld [vmem:[#allocation2 + $0x88] sm:$0xff]
    %v675 = vld [vmem:[#allocation2 + $0x90] sm:$0xff]
    %v676 = vld [vmem:[#allocation2 + $0x98] sm:$0xff]
    %v677 = vld [vmem:[#allocation2 + $0xa0] sm:$0xff]
    %v678 = vld [vmem:[#allocation2 + $0xa8] sm:$0xff]
    %v679 = vld [vmem:[#allocation2 + $0xb0] sm:$0xff]
    %v680 = vld [vmem:[#allocation2 + $0xb8] sm:$0xff]
    %v681 = vld [vmem:[#allocation2 + $0xc0] sm:$0xff]
    %v682 = vld [vmem:[#allocation2 + $0xc8] sm:$0xff]
    %v683 = vld [vmem:[#allocation2 + $0xd0] sm:$0xff]
    %v684 = vld [vmem:[#allocation2 + $0xd8] sm:$0xff]
    %v685 = vld [vmem:[#allocation2 + $0xe0] sm:$0xff]
    %v686 = vld [vmem:[#allocation2 + $0xe8] sm:$0xff]
    %v687 = vld [vmem:[#allocation2 + $0xf0] sm:$0xff]
    %v688 = vld [vmem:[#allocation2 + $0xf8] sm:$0xff]
    %v689 = vld [vmem:[#allocation2 + $0x100] sm:$0xff]
    %v690 = vld [vmem:[#allocation2 + $0x108] sm:$0xff]
    %v691 = vld [vmem:[#allocation2 + $0x110] sm:$0xff]
    %v692 = vld [vmem:[#allocation2 + $0x118] sm:$0xff]
    %v693 = vpack.c.bf16 %v661, %v657
    %v694 = vpack.c.bf16 %v662, %v658
    %v695 = vpack.c.bf16 %v663, %v659
    %v696 = vpack.c.bf16 %v664, %v660
    %v697 = vpack.c.bf16 %v669, %v665
    %v698 = vpack.c.bf16 %v670, %v666
    %v699 = vpack.c.bf16 %v671, %v667
    %v700 = vpack.c.bf16 %v672, %v668
    %v701 = vpack.c.bf16 %v677, %v673
    %v702 = vpack.c.bf16 %v678, %v674
    %v703 = vpack.c.bf16 %v679, %v675
    %v704 = vpack.c.bf16 %v680, %v676
    %v705 = vpack.c.bf16 %v685, %v681
    %v706 = vpack.c.bf16 %v686, %v682
    %v707 = vpack.c.bf16 %v687, %v683
    %v708 = vpack.c.bf16 %v688, %v684
    %v709 = vpack.c.bf16 %v689, %v689
    %v710 = vpack.c.bf16 %v690, %v690
    %v711 = vpack.c.bf16 %v691, %v691
    %v712 = vpack.c.bf16 %v692, %v692
    %v713 = vld [vmem:[%s2] sm:$0xf]
    %v714 = vld [vmem:[%s3] sm:$0xff]
    %716 = vset.pattern.permute.xlu0 0
    %717 = vperm.xlu0 %716, %v714
    %v718 = vpop.permute.xlu0 %717
    %v721 = vsel %vm344, %v713, 0
    %v724 = vsel %vm348, %v709, 0
    %v727 = vsel %vm348, %v710, 0
    %v730 = vsel %vm348, %v711, 0
    %v733 = vsel %vm348, %v712, 0
    %735 = vmatprep.subr.bf16.mxu0 0
    %736 = vmatpush1.bf16.msra.mxu0 0
    %737 = vmatprep.subr.bf16.mxu0 0
    %738 = vmatpush1.bf16.msra.mxu0 0
    %739 = vmatprep.subr.bf16.mxu0 0
    %740 = vmatpush1.bf16.msra.mxu0 0
    %741 = vmatprep.subr.bf16.mxu0 %v727
    %742 = vmatpush1.bf16.msra.mxu0 %v724
    %743 = vmatprep.subr.bf16.mxu0 %v706
    %744 = vmatpush1.bf16.msra.mxu0 %v705
    %745 = vmatprep.subr.bf16.mxu0 %v702
    %746 = vmatpush1.bf16.msra.mxu0 %v701
    %747 = vmatprep.subr.bf16.mxu0 %v698
    %748 = vmatpush1.bf16.msra.mxu0 %v697
    %749 = vmatprep.subr.bf16.mxu0 %v694
    %750 = vmatpush1.bf16.msra.mxu0 %v693
    %751 = vmatprep.subr.bf16.mxu0 0
    %752 = vmatpush2.bf16.msra.mxu0 0
    %753 = vmatprep.subr.bf16.mxu0 0
    %754 = vmatpush2.bf16.msra.mxu0 0
    %755 = vmatprep.subr.bf16.mxu0 0
    %756 = vmatpush2.bf16.msra.mxu0 0
    %757 = vmatprep.subr.bf16.mxu0 0
    %758 = vmatpush2.bf16.msra.mxu0 0
    %759 = vmatprep.subr.bf16.mxu0 0
    %760 = vmatpush2.bf16.msra.mxu0 0
    %761 = vmatprep.subr.bf16.mxu0 0
    %762 = vmatpush2.bf16.msra.mxu0 0
    %763 = vmatprep.subr.bf16.mxu0 0
    %764 = vmatpush2.bf16.msra.mxu0 0
    %765 = vmatprep.subr.bf16.mxu0 0
    %766 = vmatpush2.bf16.msra.mxu0 0
    %767 = vmatprep.mubr.bf16.mxu0 0
    %768 = vmatmul.mubr.bf16.gmra.mxu0 %v721
    %v769 = vpop.f32.mrf.mxu0
    %v770 = vadd.f32 %v718, %v769
    %v771 = vpop.f32.mrf.mxu0
    %v772 = vadd.f32 %v718, %v771
    %v773 = vpop.f32.mrf.mxu0
    %v774 = vpop.f32.mrf.mxu0
    %775 = vdwg.mxu0
    %776 = vmatprep.subr.bf16.mxu0 0
    %777 = vmatpush1.bf16.msra.mxu0 0
    %778 = vmatprep.subr.bf16.mxu0 0
    %779 = vmatpush1.bf16.msra.mxu0 0
    %780 = vmatprep.subr.bf16.mxu0 0
    %781 = vmatpush1.bf16.msra.mxu0 0
    %782 = vmatprep.subr.bf16.mxu0 %v733
    %783 = vmatpush1.bf16.msra.mxu0 %v730
    %784 = vmatprep.subr.bf16.mxu0 %v708
    %785 = vmatpush1.bf16.msra.mxu0 %v707
    %786 = vmatprep.subr.bf16.mxu0 %v704
    %787 = vmatpush1.bf16.msra.mxu0 %v703
    %788 = vmatprep.subr.bf16.mxu0 %v700
    %789 = vmatpush1.bf16.msra.mxu0 %v699
    %790 = vmatprep.subr.bf16.mxu0 %v696
    %791 = vmatpush1.bf16.msra.mxu0 %v695
    %792 = vmatprep.subr.bf16.mxu0 0
    %793 = vmatpush2.bf16.msra.mxu0 0
    %794 = vmatprep.subr.bf16.mxu0 0
    %795 = vmatpush2.bf16.msra.mxu0 0
    %796 = vmatprep.subr.bf16.mxu0 0
    %797 = vmatpush2.bf16.msra.mxu0 0
    %798 = vmatprep.subr.bf16.mxu0 0
    %799 = vmatpush2.bf16.msra.mxu0 0
    %800 = vmatprep.subr.bf16.mxu0 0
    %801 = vmatpush2.bf16.msra.mxu0 0
    %802 = vmatprep.subr.bf16.mxu0 0
    %803 = vmatpush2.bf16.msra.mxu0 0
    %804 = vmatprep.subr.bf16.mxu0 0
    %805 = vmatpush2.bf16.msra.mxu0 0
    %806 = vmatprep.subr.bf16.mxu0 0
    %807 = vmatpush2.bf16.msra.mxu0 0
    %808 = vmatprep.mubr.bf16.mxu0 0
    %809 = vmatmul.mubr.bf16.gmra.mxu0 %v721
    %v810 = vpop.f32.mrf.mxu0
    %v811 = vadd.f32 %v718, %v810
    %v812 = vpop.f32.mrf.mxu0
    %v813 = vadd.f32 %v718, %v812
    %v814 = vpop.f32.mrf.mxu0
    %v815 = vpop.f32.mrf.mxu0
    %816 = vdwg.mxu0
    %vm817 = vcmp.gt.f32.partialorder %v770, 0.0
    %vm818 = vcmp.gt.f32.partialorder %v772, 0.0
    %vm819 = vcmp.gt.f32.partialorder %v811, 0.0
    %vm820 = vcmp.gt.f32.partialorder %v813, 0.0
    %s821 = sld [smem:[#allocation9 + $0x1]]
    %v822 = vstv %s821
    %v823 = vmul.f32 %v822, %v770
    %v824 = vmul.f32 %v822, %v772
    %v825 = vmul.f32 %v822, %v811
    %v826 = vmul.f32 %v822, %v813
    %v827 = vsel %vm817, %v770, %v823
    %v828 = vsel %vm818, %v772, %v824
    %v829 = vsel %vm819, %v811, %v825
    %v830 = vsel %vm820, %v813, %v826
    %v831 = vadd.f32 %v827, %v400
    %v832 = vadd.f32 %v828, %v402
    %v833 = vadd.f32 %v829, %v443
    %v834 = vadd.f32 %v830, %v445
    %835 = vst [vmem:[#allocation10] sm:$0xff] %v831
    %836 = vst [vmem:[#allocation10 + $0x8] sm:$0xff] %v832
    %837 = vst [vmem:[#allocation10 + $0x10] sm:$0xff] %v833
    %838 = vst [vmem:[#allocation10 + $0x18] sm:$0xff] %v834
    // Predicated region
    $region38: #{tpu_custom_call.1} parent=1 // pred_check
      _
    $region39: #{tpu_custom_call.1} parent=1 // pred_check_branch
      %840 = sbr.rel (0) target = $region41
    $region40: #{tpu_custom_call.1} parent=1 // pred_region
      %s842 = ssub.s32 512, 512
      %843 = vsyncadd [#allocation5], %s842
      %s845 = sshll.u32 [#allocation10], 4
      %s846 = int_to_ptr.vmem [resolvable:$true] %s845
      %848 = dma.vmem_to_hbm [thread:$0]  %s846, 512, %s6, [#allocation5]
    $region41: #{tpu_custom_call.1} parent=1 // pred_fallthru
      _
    // Predicated region
    $region42: #{tpu_custom_call.1} parent=1 // pred_check
      _
    $region43: #{tpu_custom_call.1} parent=1 // pred_check_branch
      %850 = sbr.rel (0) target = $region45
    $region44: #{tpu_custom_call.1} parent=1 // pred_region
      %851 = dma.done [#allocation5], 512
    $region45: #{tpu_custom_call.1} parent=1 // pred_fallthru
      _
    %852 = vsyncpa [#allocation4], 1
    %853 = vsyncpa [#allocation8], 1
    %854 = vsyncpa [#allocation5], 1
    %855 = vsyncpa [#allocation6], 1

</llo_original>
